<compile_context>
chip_gen: v5e
topology: v5e:2x2
jax: 0.10.0
libtpu: 0.0.40
codegen_flags: <defaults>
</compile_context>

<pallas_src>
import jax
import jax.numpy as jnp
import numpy as np
from jax.experimental import pallas as pl
from jax.experimental.pallas import tpu as pltpu

LOSS_W = 0.636     # hard-coded loss weights from the reference module's p_losses
VLOSS_W = 2.964


# ----------------------------------------------------------------------------
# Diffusion schedule (linear beta schedule, as in make_beta_schedule('linear'))
# ----------------------------------------------------------------------------
def make_diffusion_buffers(n_timestep=1000, beta_start=1e-4, beta_end=2e-2,
                           use_p2=False, p2_k=1.0):
    betas = np.linspace(beta_start, beta_end, n_timestep, dtype=np.float64)
    alphas = 1.0 - betas
    alphas_cumprod = np.cumprod(alphas, axis=0)
    gamma = 0.5 if use_p2 else 0.0
    p2_loss_weight = (p2_k + alphas_cumprod / (1.0 - alphas_cumprod)) ** (-gamma)
    return {
        "sqrt_alphas_cumprod": jnp.asarray(np.sqrt(alphas_cumprod), jnp.float32),
        "sqrt_one_minus_alphas_cumprod": jnp.asarray(
            np.sqrt(1.0 - alphas_cumprod), jnp.float32),
        "p2_loss_weight": jnp.asarray(p2_loss_weight, jnp.float32),
    }


# ----------------------------------------------------------------------------
# Pallas kernel: q_sample + synthetic denoiser + weighted L1 + velocity loss
# One grid step == one batch element.
# ----------------------------------------------------------------------------
def diffusion_loss_kernel(coef_ref, x_ref, noise_ref, bias_ref, w_ref, out_ref):
    # coef_ref : SMEM (B, 4) f32  [sqrt_ac, sqrt_1m, lw, vw] per batch
    # x_ref    : VMEM (H, D) f32  clean trajectory slab for batch b
    # noise_ref: VMEM (H, D) f32
    # bias_ref : VMEM (1, D) f32  cond @ Wc + time_emb + b (hoisted, bcast over H)
    # w_ref    : VMEM (D, D) bf16 synthetic denoiser weight (resident across grid)
    # out_ref  : VMEM (1, 128) f32 lane-dense partials: lane0 = weighted L1,
    #            lane1 = weighted velocity loss, lanes 2..127 = 0
    b = pl.program_id(0)
    sa = coef_ref[b, 0]          # sqrt(alphas_cumprod[t_b])
    sm = coef_ref[b, 1]          # sqrt(1 - alphas_cumprod[t_b])
    lw = coef_ref[b, 2]          # 0.636 * p2w_b / (B*H*D)
    vw = coef_ref[b, 3]          # 2.964 * p2w_b / (B*(H-1)*D)

    x = x_ref[...]               # (H, D)
    noise = noise_ref[...]       # (H, D)

    # ---- q_sample (kept f32: v5e has no bf16 VALU; on v6e/v7x this elementwise
    # path could be bf16 end-to-end for another ~2x HBM-byte reduction) ---------
    x_noisy = sa * x + sm * noise

    # ---- synthetic denoiser: one bf16 MXU matmul, f32 accumulation ------------
    model_out = jnp.dot(x_noisy.astype(jnp.bfloat16), w_ref[...],
                        preferred_element_type=jnp.float32) + bias_ref[...]

    # predict_epsilon=True -> target is the noise; shared residual
    diff = model_out - noise                                     # (H, D)

    # ---- L1 reconstruction partial (per-batch weight applied to the scalar) ---
    l1 = jnp.sum(jnp.sum(jnp.abs(diff), axis=1, keepdims=True),
                 axis=0, keepdims=True)                          # (1, 1)

    # ---- velocity partial (finite difference along the horizon) ---------------
    # TODO(synk): at >=512-row tiles switch to pltpu.roll(diff, ...) so the shifted
    # operand stays (8,128)-tile aligned; at H=8 rows per block the slices are free.
    vdiff = diff[1:, :] - diff[:-1, :]                           # (H-1, D)
    vl = jnp.sum(jnp.sum(jnp.abs(vdiff), axis=1, keepdims=True),
                 axis=0, keepdims=True)                          # (1, 1)

    # ---- single lane-dense output: unmasked full-width store ------------------
    lane = jax.lax.broadcasted_iota(jnp.int32, out_ref.shape, 1)  # (1, 128)
    out_ref[...] = jnp.where(lane == 0, lw * l1,
                             jnp.where(lane == 1, vw * vl, 0.0))


# ----------------------------------------------------------------------------
# Wrapper: GaussianDiffusion.forward(x, cond, t_override=None)
# ----------------------------------------------------------------------------
def gaussian_diffusion_forward(x, cond, params, buffers, key,
                               n_timestep=1000, t_override=None):
    B, H, D = x.shape
    assert H >= 2, "velocity loss requires horizon >= 2"
    k_noise, k_t = jax.random.split(key)

    # t sampling (torch.randint(0, n_timestep, (B,)))
    if t_override is None:
        t = jax.random.randint(k_t, (B,), 0, n_timestep)
    else:
        t = jnp.full((B,), t_override, dtype=jnp.int32)

    noise = jax.random.normal(k_noise, x.shape, dtype=x.dtype)

    # extract(buf, t, shape) gathers (cheap glue)
    sqrt_ac = buffers["sqrt_alphas_cumprod"][t]                 # (B,)
    sqrt_1m = buffers["sqrt_one_minus_alphas_cumprod"][t]       # (B,)
    p2w = buffers["p2_loss_weight"][t]                          # (B,)

    # sinusoidal time embedding for the synthetic denoiser (glue)
    half = D // 2
    freqs = jnp.exp(-jnp.log(10000.0) * jnp.arange(half, dtype=jnp.float32) / half)
    targ = t[:, None].astype(jnp.float32) * freqs[None, :]
    temb = jnp.concatenate([jnp.sin(targ), jnp.cos(targ)], axis=-1)   # (B, D)

    # TODO(synk): cond_drop_prob (classifier-free-guidance dropout) lives inside the
    # external denoiser model and is not reproduced by this synthetic linear model.

    # Hoisted conditioning: ONE (B, 1, D) bias row per batch (no H duplication).
    bias_b = (cond @ params["Wc"] + temb + params["b"]).astype(jnp.float32)
    bias_b = bias_b.reshape(B, 1, D)

    # Per-batch coefficient table -> SMEM.  p2 weight, the 1/N mean factors and
    # the 0.636 / 2.964 loss weights are all folded into per-batch scalars.
    lw = LOSS_W * p2w / float(B * H * D)
    vw = VLOSS_W * p2w / float(B * (H - 1) * D)
    coef = jnp.stack([sqrt_ac, sqrt_1m, lw, vw], axis=1).astype(jnp.float32)  # (B,4)

    w_bf16 = params["W"].astype(jnp.bfloat16)      # bf16 HBM storage + MXU operand

    grid_spec = pltpu.PrefetchScalarGridSpec(
        num_scalar_prefetch=0,
        grid=(B,),
        in_specs=[
            pl.BlockSpec(memory_space=pltpu.MemorySpace.SMEM),      # coef (B, 4)
            pl.BlockSpec((None, H, D), lambda b: (b, 0, 0)),        # x slab
            pl.BlockSpec((None, H, D), lambda b: (b, 0, 0)),        # noise slab
            pl.BlockSpec((None, 1, D), lambda b: (b, 0, 0)),        # bias row
            pl.BlockSpec((D, D), lambda b: (0, 0)),                 # W (resident)
        ],
        out_specs=pl.BlockSpec((None, 1, 128), lambda b: (b, 0, 0)),
    )

    partials = pl.pallas_call(
        diffusion_loss_kernel,
        grid_spec=grid_spec,
        out_shape=jax.ShapeDtypeStruct((B, 1, 128), jnp.float32),
        compiler_params=pltpu.CompilerParams(
            dimension_semantics=("parallel",),      # megacore / v7x 2-TC shardable
            vmem_limit_bytes=32 * 1024 * 1024,      # sweep higher on v5e/v6e; keep
        ),                                          # tiles ~half-size on v7x (64 MiB)
    )(coef, x, noise, bias_b, w_bf16)

    # trivial scalar glue: sum the per-batch lane-dense partials
    sums = jnp.sum(partials, axis=(0, 1))            # (128,)
    loss_term, v_term = sums[0], sums[1]
    # TODO(synk): fk_loss requires smplToPositionLoss (SMPL forward kinematics),
    # which is not defined in the reference module; it is omitted here.
    total = loss_term + v_term                       # sum(losses)
    return total, (loss_term, v_term), (noise, t, temb, sqrt_ac, sqrt_1m, p2w)


# Pure-JAX reference of the same computation (matches the module semantics; the
# synthetic denoiser is defined as a bf16-MXU linear layer in both paths).
def reference_forward(x, cond, params, noise, temb, sqrt_ac, sqrt_1m, p2w):
    B, H, D = x.shape
    x_noisy = sqrt_ac[:, None, None] * x + sqrt_1m[:, None, None] * noise
    lin = jnp.einsum("bhd,de->bhe", x_noisy.astype(jnp.bfloat16),
                     params["W"].astype(jnp.bfloat16),
                     preferred_element_type=jnp.float32)
    model_out = (lin + params["b"][None, :, :]
                 + (cond @ params["Wc"])[:, None, :] + temb[:, None, :])
    target = noise
    loss = jnp.mean(jnp.abs(model_out - target).reshape(B, -1), axis=1) * p2w
    mv = model_out[:, 1:] - model_out[:, :-1]
    tv = target[:, 1:] - target[:, :-1]
    v_loss = jnp.mean(jnp.abs(mv - tv).reshape(B, -1), axis=1) * p2w
    return LOSS_W * jnp.mean(loss) + VLOSS_W * jnp.mean(v_loss)


if __name__ == "__main__":
    B, H, D, C = 2, 8, 32, 16        # batch, horizon, repr_dim, cond_dim
    n_timestep = 1000

    key = jax.random.PRNGKey(0)
    kx, kc, kw, kwc, kfwd = jax.random.split(key, 5)

    x = jax.random.normal(kx, (B, H, D), dtype=jnp.float32)
    cond = jax.random.normal(kc, (B, C), dtype=jnp.float32)

    # deterministic synthetic denoiser parameters
    params = {
        "W": 0.05 * jax.random.normal(kw, (D, D), dtype=jnp.float32),
        "b": jnp.zeros((1, D), jnp.float32),
        "Wc": 0.05 * jax.random.normal(kwc, (C, D), dtype=jnp.float32),
    }

    buffers = make_diffusion_buffers(n_timestep=n_timestep, use_p2=False)

    total, (loss_t, v_t), (noise, t, temb, sa, sm, p2w) = gaussian_diffusion_forward(
        x, cond, params, buffers, kfwd, n_timestep=n_timestep)
    total = jax.block_until_ready(total)

    ref = reference_forward(x, cond, params, noise, temb, sa, sm, p2w)
    np.testing.assert_allclose(np.asarray(total), np.asarray(ref),
                               rtol=2e-3, atol=2e-3)

    print("KERNEL_OK")
</pallas_src>

<mosaic_0001>
module attributes {stable_mosaic.version = 11 : i64} {
  func.func @diffusion_loss_kernel(%arg0: i32, %arg1: memref<2x4xf32, #tpu.memory_space<smem>>, %arg2: memref<1x8x32xf32, #tpu.memory_space<vmem>>, %arg3: memref<1x8x32xf32, #tpu.memory_space<vmem>>, %arg4: memref<1x1x32xf32, #tpu.memory_space<vmem>>, %arg5: memref<32x32xbf16, #tpu.memory_space<vmem>>, %arg6: memref<1x1x128xf32, #tpu.memory_space<vmem>>) attributes {dimension_semantics = [#tpu.dimension_semantics<parallel>], iteration_bounds = array<i64: 2>, scalar_prefetch = 0 : i64, scratch_operands = 0 : i64, tpu.core_type = #tpu.core_type<tc>, window_params = [{transform_indices = @transform_0, window_bounds = array<i64: 2, 4>}, {transform_indices = @transform_1, window_bounds = array<i64: 1, 8, 32>}, {transform_indices = @transform_2, window_bounds = array<i64: 1, 8, 32>}, {transform_indices = @transform_3, window_bounds = array<i64: 1, 1, 32>}, {pipeline_mode = #tpu.pipeline_mode<synchronous>, transform_indices = @transform_4, window_bounds = array<i64: 32, 32>}, {transform_indices = @transform_5, window_bounds = array<i64: 1, 1, 128>}]} {
    %0 = arith.index_cast %arg0 : i32 to index
    %c0 = arith.constant 0 : index
    %1 = memref.load %arg1[%0, %c0] : memref<2x4xf32, #tpu.memory_space<smem>>
    %2 = arith.index_cast %arg0 : i32 to index
    %c1 = arith.constant 1 : index
    %3 = memref.load %arg1[%2, %c1] : memref<2x4xf32, #tpu.memory_space<smem>>
    %4 = arith.index_cast %arg0 : i32 to index
    %c2 = arith.constant 2 : index
    %5 = memref.load %arg1[%4, %c2] : memref<2x4xf32, #tpu.memory_space<smem>>
    %6 = arith.index_cast %arg0 : i32 to index
    %c3 = arith.constant 3 : index
    %7 = memref.load %arg1[%6, %c3] : memref<2x4xf32, #tpu.memory_space<smem>>
    %c0_0 = arith.constant 0 : index
    %c0_1 = arith.constant 0 : index
    %c0_2 = arith.constant 0 : index
    %8 = vector.load %arg2[%c0_0, %c0_1, %c0_2] : memref<1x8x32xf32, #tpu.memory_space<vmem>>, vector<1x8x32xf32>
    %9 = vector.shape_cast %8 : vector<1x8x32xf32> to vector<8x32xf32>
    %c0_3 = arith.constant 0 : index
    %c0_4 = arith.constant 0 : index
    %c0_5 = arith.constant 0 : index
    %10 = vector.load %arg3[%c0_3, %c0_4, %c0_5] : memref<1x8x32xf32, #tpu.memory_space<vmem>>, vector<1x8x32xf32>
    %11 = vector.shape_cast %10 : vector<1x8x32xf32> to vector<8x32xf32>
    %12 = vector.broadcast %1 : f32 to vector<8x32xf32>
    %13 = arith.mulf %12, %9 : vector<8x32xf32>
    %14 = vector.broadcast %3 : f32 to vector<8x32xf32>
    %15 = arith.mulf %14, %11 : vector<8x32xf32>
    %16 = arith.addf %13, %15 : vector<8x32xf32>
    %17 = arith.truncf %16 : vector<8x32xf32> to vector<8x32xbf16>
    %c0_6 = arith.constant 0 : index
    %c0_7 = arith.constant 0 : index
    %18 = vector.load %arg5[%c0_6, %c0_7] : memref<32x32xbf16, #tpu.memory_space<vmem>>, vector<32x32xbf16>
    %cst = arith.constant dense<0.000000e+00> : vector<8x32xf32>
    %19 = tpu.matmul %17, %18, %cst {dimension_numbers = #tpu.dot_dimension_numbers<[1], [0], [0], [1], [0, 0, 1, 1], [], []>} : vector<8x32xbf16>, vector<32x32xbf16>, vector<8x32xf32> -> vector<8x32xf32>
    %c0_8 = arith.constant 0 : index
    %c0_9 = arith.constant 0 : index
    %c0_10 = arith.constant 0 : index
    %20 = vector.load %arg4[%c0_8, %c0_9, %c0_10] : memref<1x1x32xf32, #tpu.memory_space<vmem>>, vector<1x1x32xf32>
    %21 = vector.shape_cast %20 : vector<1x1x32xf32> to vector<1x32xf32>
    %22 = vector.broadcast %21 : vector<1x32xf32> to vector<8x32xf32>
    %23 = arith.addf %19, %22 : vector<8x32xf32>
    %24 = arith.subf %23, %11 : vector<8x32xf32>
    %25 = math.absf %24 : vector<8x32xf32>
    %cst_11 = arith.constant dense<0.000000e+00> : vector<8xf32>
    %26 = vector.multi_reduction <add>, %25, %cst_11 [1] : vector<8x32xf32> to vector<8xf32>
    %27 = vector.shape_cast %26 : vector<8xf32> to vector<8x1xf32>
    %cst_12 = arith.constant dense<0.000000e+00> : vector<1xf32>
    %28 = vector.multi_reduction <add>, %27, %cst_12 [0] : vector<8x1xf32> to vector<1xf32>
    %29 = vector.shape_cast %28 : vector<1xf32> to vector<1x1xf32>
    %30 = vector.extract_strided_slice %24 {offsets = [1, 0], sizes = [7, 32], strides = [1, 1]} : vector<8x32xf32> to vector<7x32xf32>
    %31 = vector.extract_strided_slice %24 {offsets = [0, 0], sizes = [7, 32], strides = [1, 1]} : vector<8x32xf32> to vector<7x32xf32>
    %32 = arith.subf %30, %31 : vector<7x32xf32>
    %33 = math.absf %32 : vector<7x32xf32>
    %cst_13 = arith.constant dense<0.000000e+00> : vector<7xf32>
    %34 = vector.multi_reduction <add>, %33, %cst_13 [1] : vector<7x32xf32> to vector<7xf32>
    %35 = vector.shape_cast %34 : vector<7xf32> to vector<7x1xf32>
    %cst_14 = arith.constant dense<0.000000e+00> : vector<1xf32>
    %36 = vector.multi_reduction <add>, %35, %cst_14 [0] : vector<7x1xf32> to vector<1xf32>
    %37 = vector.shape_cast %36 : vector<1xf32> to vector<1x1xf32>
    %38 = tpu.iota {dimensions = array<i32: 1>} : vector<1x128xi32>
    %c0_i32 = arith.constant 0 : i32
    %39 = vector.broadcast %c0_i32 : i32 to vector<1x128xi32>
    %40 = arith.cmpi eq, %38, %39 : vector<1x128xi32>
    %41 = vector.broadcast %5 : f32 to vector<1x1xf32>
    %42 = arith.mulf %41, %29 : vector<1x1xf32>
    %c1_i32 = arith.constant 1 : i32
    %43 = vector.broadcast %c1_i32 : i32 to vector<1x128xi32>
    %44 = arith.cmpi eq, %38, %43 : vector<1x128xi32>
    %45 = vector.broadcast %7 : f32 to vector<1x1xf32>
    %46 = arith.mulf %45, %37 : vector<1x1xf32>
    %cst_15 = arith.constant 0.000000e+00 : f32
    %47 = vector.shape_cast %46 : vector<1x1xf32> to vector<1x1xf32>
    %48 = vector.broadcast %47 : vector<1x1xf32> to vector<1x128xf32>
    %49 = vector.broadcast %cst_15 : f32 to vector<1x128xf32>
    %50 = arith.select %44, %48, %49 : vector<1x128xi1>, vector<1x128xf32>
    %51 = vector.shape_cast %42 : vector<1x1xf32> to vector<1x1xf32>
    %52 = vector.broadcast %51 : vector<1x1xf32> to vector<1x128xf32>
    %53 = arith.select %40, %52, %50 : vector<1x128xi1>, vector<1x128xf32>
    %c0_16 = arith.constant 0 : index
    %c0_17 = arith.constant 0 : index
    %c0_18 = arith.constant 0 : index
    %54 = vector.load %arg6[%c0_16, %c0_17, %c0_18] : memref<1x1x128xf32, #tpu.memory_space<vmem>>, vector<1x1x128xf32>
    %55 = vector.shape_cast %54 : vector<1x1x128xf32> to vector<1x128xf32>
    %56 = vector.shape_cast %53 : vector<1x128xf32> to vector<1x1x128xf32>
    tpu.vector_store %arg6[%c0_16, %c0_17, %c0_18], %56 {strides = array<i32>} : memref<1x1x128xf32, #tpu.memory_space<vmem>>, vector<1x1x128xf32>,
    return
  }
  func.func @transform_0(%arg0: i32) -> (i32, i32) {
    %c0_i32 = arith.constant 0 : i32
    %c0_i32_0 = arith.constant 0 : i32
    %c0_i32_1 = arith.constant 0 : i32
    return %c0_i32, %c0_i32_0 : i32, i32
  }
  func.func @transform_1(%arg0: i32) -> (i32, i32, i32) {
    %c0_i32 = arith.constant 0 : i32
    %c0_i32_0 = arith.constant 0 : i32
    %c0_i32_1 = arith.constant 0 : i32
    return %arg0, %c0_i32, %c0_i32_0 : i32, i32, i32
  }
  func.func @transform_2(%arg0: i32) -> (i32, i32, i32) {
    %c0_i32 = arith.constant 0 : i32
    %c0_i32_0 = arith.constant 0 : i32
    %c0_i32_1 = arith.constant 0 : i32
    return %arg0, %c0_i32, %c0_i32_0 : i32, i32, i32
  }
  func.func @transform_3(%arg0: i32) -> (i32, i32, i32) {
    %c0_i32 = arith.constant 0 : i32
    %c0_i32_0 = arith.constant 0 : i32
    %c0_i32_1 = arith.constant 0 : i32
    return %arg0, %c0_i32, %c0_i32_0 : i32, i32, i32
  }
  func.func @transform_4(%arg0: i32) -> (i32, i32) {
    %c0_i32 = arith.constant 0 : i32
    %c0_i32_0 = arith.constant 0 : i32
    %c0_i32_1 = arith.constant 0 : i32
    return %c0_i32, %c0_i32_0 : i32, i32
  }
  func.func @transform_5(%arg0: i32) -> (i32, i32, i32) {
    %c0_i32 = arith.constant 0 : i32
    %c0_i32_0 = arith.constant 0 : i32
    %c0_i32_1 = arith.constant 0 : i32
    return %arg0, %c0_i32, %c0_i32_0 : i32, i32, i32
  }
}

</mosaic_0001>

<llo_original>
// kernel: tpu_custom_call.1
$region0: #{tpu_custom_call.1}
  #allocation0 [shape = 'u32[]', space=smem, size = 0x4, offset = 0x4, fixed_abs, tag = 'smem constant byte address 0x4 - core index']
  #allocation1 [shape = 'u32[72,128]{1,0:T(1,128)}', space=vmem, size = 0x9000, scoped, tag = 'internal scratch']
  %s0 = inlined_call_operand.hbm [shape: f32[2,4], index: 0, kind: input, shape index: {}]
  %s1 = inlined_call_operand.hbm [shape: f32[2,8,32], index: 1, kind: input, shape index: {}]
  %s2 = inlined_call_operand.hbm [shape: f32[2,8,32], index: 2, kind: input, shape index: {}]
  %s3 = inlined_call_operand.vmem [shape: f32[2,1,32], index: 3, kind: input, shape index: {}]
  %s4 = inlined_call_operand.hbm [shape: bf16[32,32], index: 4, kind: input, shape index: {}]
  %s5 = inlined_call_operand.hbm [shape: f32[2,1,128], index: 5, kind: output, shape index: {}]
  %s6 = sld [smem:[#allocation0]]
  $region69: #{tpu_custom_call.1} parent=0
    _
  %s8 = ssub.s32 1, %s6
  %s9 = scalar_select 0, %s8, %s6
  $region1: #{tpu_custom_call.1} parent=0
    #allocation2 [shape = 'u8[1024]{0}', space=smem, size = 0x400, scoped, tag = 'input window, operand 0, single buffered']
    #allocation3 [shape = 's32[2]{0}', space=sflag, size = 0x8, scoped, tag = 'scoped memory for tpu_custom_call.1']
    #allocation4 [shape = 's32[2]{0}', space=sflag, size = 0x8, scoped, tag = 'scoped memory for tpu_custom_call.1']
    #allocation5 [shape = 's32[2]{0}', space=sflag, size = 0x8, scoped, tag = 'scoped memory for tpu_custom_call.1']
    #allocation6 [shape = 'u8[8192]{0}', space=vmem, size = 0x2000, scoped, tag = 'input window, operand 1']
    #allocation7 [shape = 'u8[8192]{0}', space=vmem, size = 0x2000, scoped, tag = 'input window, operand 2']
    #allocation8 [shape = 's32[2]{0}', space=sflag, size = 0x8, scoped, tag = 'scoped memory for tpu_custom_call.1']
    #allocation9 [shape = 'u8[8192]{0}', space=vmem, size = 0x2000, scoped, tag = 'input window, operand 4, single buffered']
    #allocation10 [shape = 'u8[1024]{0}', space=vmem, size = 0x400, scoped, tag = 'output window, operand 0']
    %10 = vsyncpa [#allocation5], 0
    %11 = vsyncpa [#allocation3], 0
    %s12 = scalar_lea.sflag [#allocation3], 1
    %13 = vsyncpa %s12, 0
    %14 = vsyncpa [#allocation8], 0
    %s15 = scalar_lea.sflag [#allocation8], 1
    %16 = vsyncpa %s15, 0
    %17 = vsyncpa [#allocation4], 0
    %s18 = scalar_lea.sflag [#allocation4], 1
    %19 = vsyncpa %s18, 0
    loop: start=0, step=1, limit=4
    $region2: #{tpu_custom_call.1} parent=1 // loop_pre_header
      _
    $region3: #{tpu_custom_call.1} parent=1 // loop_header
      %s21 = sphi 0, %s25
      %p22 = scmp.ge.s32.totalorder %s21, 4
      %s29 = sphi 0, %s29
      %s31 = sphi 0, %s29
      %s32 = sphi 0, %s31
      %s46 = sphi 0, %s32
      %s52 = sphi 0, %s54
      %s55 = sphi 0, %s52
      %s56 = sphi 0, %s55
      %s72 = sphi 0, %s56
      %s78 = sphi 0, %s80
      %s81 = sphi 0, %s78
      %s82 = sphi 0, %s81
      %s98 = sphi 0, %s82
      %s104 = sphi 0, %s106
      %s107 = sphi 0, %s104
      %s108 = sphi 0, %s107
      %s124 = sphi 0, %s108
      %s128 = sphi 0, %s128
      %s130 = sphi 0, %s128
      %s131 = sphi 0, %s130
      %s145 = sphi 0, %s131
      %s151 = sphi 0, %s153
      %s154 = sphi 0, %s151
      %s155 = sphi 0, %s154
      %s171 = sphi 0, %s155
    $region4: #{tpu_custom_call.1} parent=1 // loop_header_branch
      %24 = sbr.rel (%p22) target = $region8
    $region5: #{tpu_custom_call.1} parent=1 // loop_body
      %s26 = ssub.s32 %s21, 1
      %s27 = ssub.s32 %s21, 2
      %s28 = sadd.s32 %s21, 1
      %s30 = sadd.s32 %s29, 1
      %p33 = scmp.eq.s32.totalorder %s21, 1
      %p34 = scmp.ne.s32.totalorder %s29, %s31
      %p35 = scmp.eq.s32.totalorder %s21, 0
      %p36 = por %p34, %p35
      %p37 = scmp.ne.s32.totalorder %s29, %s31
      %p38 = scmp.eq.s32.totalorder %s26, 1
      %p39 = por %p37, %p38
      %p40 = scmp.ne.s32.totalorder %s31, %s32
      %p41 = scmp.eq.s32.totalorder %s26, 0
      %p42 = por %p40, %p41
      %p43 = scmp.ne.s32.totalorder %s31, %s32
      %p44 = scmp.eq.s32.totalorder %s27, 1
      %p45 = por %p43, %p44
      %p47 = scmp.ne.s32.totalorder %s32, %s46
      %p48 = scmp.eq.s32.totalorder %s27, 0
      %p49 = por %p47, %p48
      %s50 = ssub.s32 %s21, %s28
      %p51 = scmp.eq.s32.totalorder %s50, 0
      %s53 = sadd.s32 %s52, 1
      %s54 = scalar_select %p51, %s52, %s53
      %p57 = pneg %p51
      %p58 = scmp.eq.s32.totalorder %s21, 1
      %p59 = por %p57, %p58
      %p60 = scmp.ne.s32.totalorder %s52, %s55
      %p61 = scmp.eq.s32.totalorder %s21, 0
      %p62 = por %p60, %p61
      %p63 = scmp.ne.s32.totalorder %s52, %s55
      %p64 = scmp.eq.s32.totalorder %s26, 1
      %p65 = por %p63, %p64
      %p66 = scmp.ne.s32.totalorder %s55, %s56
      %p67 = scmp.eq.s32.totalorder %s26, 0
      %p68 = por %p66, %p67
      %p69 = scmp.ne.s32.totalorder %s55, %s56
      %p70 = scmp.eq.s32.totalorder %s27, 1
      %p71 = por %p69, %p70
      %p73 = scmp.ne.s32.totalorder %s56, %s72
      %p74 = scmp.eq.s32.totalorder %s27, 0
      %p75 = por %p73, %p74
      %s76 = ssub.s32 %s21, %s28
      %p77 = scmp.eq.s32.totalorder %s76, 0
      %s79 = sadd.s32 %s78, 1
      %s80 = scalar_select %p77, %s78, %s79
      %p83 = pneg %p77
      %p84 = scmp.eq.s32.totalorder %s21, 1
      %p85 = por %p83, %p84
      %p86 = scmp.ne.s32.totalorder %s78, %s81
      %p87 = scmp.eq.s32.totalorder %s21, 0
      %p88 = por %p86, %p87
      %p89 = scmp.ne.s32.totalorder %s78, %s81
      %p90 = scmp.eq.s32.totalorder %s26, 1
      %p91 = por %p89, %p90
      %p92 = scmp.ne.s32.totalorder %s81, %s82
      %p93 = scmp.eq.s32.totalorder %s26, 0
      %p94 = por %p92, %p93
      %p95 = scmp.ne.s32.totalorder %s81, %s82
      %p96 = scmp.eq.s32.totalorder %s27, 1
      %p97 = por %p95, %p96
      %p99 = scmp.ne.s32.totalorder %s82, %s98
      %p100 = scmp.eq.s32.totalorder %s27, 0
      %p101 = por %p99, %p100
      %s102 = ssub.s32 %s21, %s28
      %p103 = scmp.eq.s32.totalorder %s102, 0
      %s105 = sadd.s32 %s104, 1
      %s106 = scalar_select %p103, %s104, %s105
      %p109 = pneg %p103
      %p110 = scmp.eq.s32.totalorder %s21, 1
      %p111 = por %p109, %p110
      %p112 = scmp.ne.s32.totalorder %s104, %s107
      %p113 = scmp.eq.s32.totalorder %s21, 0
      %p114 = por %p112, %p113
      %p115 = scmp.ne.s32.totalorder %s104, %s107
      %p116 = scmp.eq.s32.totalorder %s26, 1
      %p117 = por %p115, %p116
      %p118 = scmp.ne.s32.totalorder %s107, %s108
      %p119 = scmp.eq.s32.totalorder %s26, 0
      %p120 = por %p118, %p119
      %p121 = scmp.ne.s32.totalorder %s107, %s108
      %p122 = scmp.eq.s32.totalorder %s27, 1
      %p123 = por %p121, %p122
      %p125 = scmp.ne.s32.totalorder %s108, %s124
      %p126 = scmp.eq.s32.totalorder %s27, 0
      %p127 = por %p125, %p126
      %s129 = sadd.s32 %s128, 1
      %p132 = scmp.eq.s32.totalorder %s21, 1
      %p133 = scmp.ne.s32.totalorder %s128, %s130
      %p134 = scmp.eq.s32.totalorder %s21, 0
      %p135 = por %p133, %p134
      %p136 = scmp.ne.s32.totalorder %s128, %s130
      %p137 = scmp.eq.s32.totalorder %s26, 1
      %p138 = por %p136, %p137
      %p139 = scmp.ne.s32.totalorder %s130, %s131
      %p140 = scmp.eq.s32.totalorder %s26, 0
      %p141 = por %p139, %p140
      %p142 = scmp.ne.s32.totalorder %s130, %s131
      %p143 = scmp.eq.s32.totalorder %s27, 1
      %p144 = por %p142, %p143
      %p146 = scmp.ne.s32.totalorder %s131, %s145
      %p147 = scmp.eq.s32.totalorder %s27, 0
      %p148 = por %p146, %p147
      %s149 = ssub.s32 %s21, %s28
      %p150 = scmp.eq.s32.totalorder %s149, 0
      %s152 = sadd.s32 %s151, 1
      %s153 = scalar_select %p150, %s151, %s152
      %p156 = pneg %p150
      %p157 = scmp.eq.s32.totalorder %s21, 1
      %p158 = por %p156, %p157
      %p159 = scmp.ne.s32.totalorder %s151, %s154
      %p160 = scmp.eq.s32.totalorder %s21, 0
      %p161 = por %p159, %p160
      %p162 = scmp.ne.s32.totalorder %s151, %s154
      %p163 = scmp.eq.s32.totalorder %s26, 1
      %p164 = por %p162, %p163
      %p165 = scmp.ne.s32.totalorder %s154, %s155
      %p166 = scmp.eq.s32.totalorder %s26, 0
      %p167 = por %p165, %p166
      %p168 = scmp.ne.s32.totalorder %s154, %s155
      %p169 = scmp.eq.s32.totalorder %s27, 1
      %p170 = por %p168, %p169
      %p172 = scmp.ne.s32.totalorder %s155, %s171
      %p173 = scmp.eq.s32.totalorder %s27, 0
      %p174 = por %p172, %p173
      %p175 = scmp.le.s32.totalorder 1, %s21
      %p176 = scmp.lt.s32.totalorder %s21, 3
      %p177 = pnand %p175, %p176
      %p178 = pneg %p177
      // Predicated region
      $region9: #{tpu_custom_call.1} parent=5 // pred_check
        _
      $region10: #{tpu_custom_call.1} parent=5 // pred_check_branch
        %180 = sbr.rel (%p177) target = $region12
      $region11: #{tpu_custom_call.1} parent=5 // pred_region
        %s181 = ssub.s32 %s21, 1
        // Predicated region
        $region13: #{tpu_custom_call.1} parent=11 // pred_check
          %p182 = pneg %p42
        $region14: #{tpu_custom_call.1} parent=11 // pred_check_branch
          %184 = sbr.rel (%p182) target = $region16
        $region15: #{tpu_custom_call.1} parent=11 // pred_region
          %186 = vsyncadd [#allocation5], 0
          %s188 = sshll.u32 %s0, 4
          %s189 = int_to_ptr.hbm [resolvable:$true] %s188
          %191 = dma.hbm_to_smem %s189, 32, [#allocation2], [#allocation5]
        $region16: #{tpu_custom_call.1} parent=11 // pred_fallthru
          _
        // Predicated region
        $region17: #{tpu_custom_call.1} parent=11 // pred_check
          %p192 = pneg %p141
        $region18: #{tpu_custom_call.1} parent=11 // pred_check_branch
          %194 = sbr.rel (%p192) target = $region20
        $region19: #{tpu_custom_call.1} parent=11 // pred_region
          %196 = vsyncadd [#allocation8], 0
          %s197 = sshll.u32 %s4, 4
          %s198 = int_to_ptr.hbm [resolvable:$true] %s197
          %s199 = sshll.u32 [#allocation9], 4
          %s200 = int_to_ptr.vmem [resolvable:$true] %s199
          %205 = dma.hbm_to_vmem [thread:$0]  %s198, 256, %s200, [#allocation8], 64, 64, 4
        $region20: #{tpu_custom_call.1} parent=11 // pred_fallthru
          _
      $region12: #{tpu_custom_call.1} parent=5 // pred_fallthru
        _
      %p206 = scmp.lt.s32.totalorder %s21, 2
      // Predicated region
      $region21: #{tpu_custom_call.1} parent=5 // pred_check
        %p207 = pneg %p206
      $region22: #{tpu_custom_call.1} parent=5 // pred_check_branch
        %209 = sbr.rel (%p207) target = $region24
      $region23: #{tpu_custom_call.1} parent=5 // pred_region
        // Predicated region
        $region25: #{tpu_custom_call.1} parent=23 // pred_check
          %p210 = pneg %p62
        $region26: #{tpu_custom_call.1} parent=23 // pred_check_branch
          %212 = sbr.rel (%p210) target = $region28
        $region27: #{tpu_custom_call.1} parent=23 // pred_region
          %s213 = sand.u32 %s52, 1
          %s214 = scalar_lea.sflag [#allocation3], %s213
          %s215 = sand.u32 %s52, 1
          %s216 = smul.addr %s215, 8
          %s217 = scalar_lea.vmem [#allocation6], %s216
          %219 = vsyncadd %s214, 0
          %s220 = smul.addr %s21, 8
          %s221 = scalar_lea.hbm %s1, %s220
          %s223 = sshll.u32 %s221, 4
          %s224 = int_to_ptr.hbm [resolvable:$true] %s223
          %s225 = sshll.u32 %s217, 4
          %s226 = int_to_ptr.vmem [resolvable:$true] %s225
          %228 = dma.hbm_to_vmem [thread:$0]  %s224, 128, %s226, %s214
        $region28: #{tpu_custom_call.1} parent=23 // pred_fallthru
          _
        // Predicated region
        $region29: #{tpu_custom_call.1} parent=23 // pred_check
          %p229 = pneg %p88
        $region30: #{tpu_custom_call.1} parent=23 // pred_check_branch
          %231 = sbr.rel (%p229) target = $region32
        $region31: #{tpu_custom_call.1} parent=23 // pred_region
          %s232 = sand.u32 %s21, 1
          %s233 = scalar_lea.sflag [#allocation8], %s232
          %s234 = sand.u32 %s78, 1
          %s235 = smul.addr %s234, 8
          %s236 = scalar_lea.vmem [#allocation7], %s235
          %238 = vsyncadd %s233, 0
          %s239 = smul.addr %s21, 8
          %s240 = scalar_lea.hbm %s2, %s239
          %s242 = sshll.u32 %s240, 4
          %s243 = int_to_ptr.hbm [resolvable:$true] %s242
          %s244 = sshll.u32 %s236, 4
          %s245 = int_to_ptr.vmem [resolvable:$true] %s244
          %247 = dma.hbm_to_vmem [thread:$0]  %s243, 128, %s245, %s233
        $region32: #{tpu_custom_call.1} parent=23 // pred_fallthru
          _
        // Predicated region
        $region33: #{tpu_custom_call.1} parent=23 // pred_check
          %p248 = pneg %p114
        $region34: #{tpu_custom_call.1} parent=23 // pred_check_branch
          %250 = sbr.rel (%p248) target = $region36
        $region35: #{tpu_custom_call.1} parent=23 // pred_region
          %p251 = scmp.lt.s32.totalorder %s21, 1
          %s252 = scalar_select %p251, %s21, 1
          %s253 = scalar_lea.vmem %s3, %s252
        $region36: #{tpu_custom_call.1} parent=23 // pred_fallthru
          _
      $region24: #{tpu_custom_call.1} parent=5 // pred_fallthru
        _
      %p254 = scmp.le.s32.totalorder 1, %s21
      %p255 = scmp.lt.s32.totalorder %s21, 3
      %p256 = pnand %p254, %p255
      %p257 = pneg %p256
      // Predicated region
      $region37: #{tpu_custom_call.1} parent=5 // pred_check
        _
      $region38: #{tpu_custom_call.1} parent=5 // pred_check_branch
        %259 = sbr.rel (%p256) target = $region40
      $region39: #{tpu_custom_call.1} parent=5 // pred_region
        %s260 = ssub.s32 %s21, 1
        // Predicated region
        $region41: #{tpu_custom_call.1} parent=39 // pred_check
          %p261 = pneg %p42
        $region42: #{tpu_custom_call.1} parent=39 // pred_check_branch
          %263 = sbr.rel (%p261) target = $region44
        $region43: #{tpu_custom_call.1} parent=39 // pred_region
          %265 = dma.done [#allocation5], 32
        $region44: #{tpu_custom_call.1} parent=39 // pred_fallthru
          _
        %s266 = sand.u32 %s55, 1
        %s267 = scalar_lea.sflag [#allocation3], %s266
        %s268 = sand.u32 %s55, 1
        %s269 = smul.addr %s268, 8
        %s270 = scalar_lea.vmem [#allocation6], %s269
        // Predicated region
        $region45: #{tpu_custom_call.1} parent=39 // pred_check
          %p271 = pneg %p68
        $region46: #{tpu_custom_call.1} parent=39 // pred_check_branch
          %273 = sbr.rel (%p271) target = $region48
        $region47: #{tpu_custom_call.1} parent=39 // pred_region
          %275 = dma.done %s267, 128
        $region48: #{tpu_custom_call.1} parent=39 // pred_fallthru
          _
        %s276 = sand.u32 %s26, 1
        %s277 = scalar_lea.sflag [#allocation8], %s276
        %s278 = sand.u32 %s81, 1
        %s279 = smul.addr %s278, 8
        %s280 = scalar_lea.vmem [#allocation7], %s279
        // Predicated region
        $region49: #{tpu_custom_call.1} parent=39 // pred_check
          %p281 = pneg %p94
        $region50: #{tpu_custom_call.1} parent=39 // pred_check_branch
          %283 = sbr.rel (%p281) target = $region52
        $region51: #{tpu_custom_call.1} parent=39 // pred_region
          %285 = dma.done %s277, 128
        $region52: #{tpu_custom_call.1} parent=39 // pred_fallthru
          _
        // Predicated region
        $region53: #{tpu_custom_call.1} parent=39 // pred_check
          %p286 = pneg %p141
        $region54: #{tpu_custom_call.1} parent=39 // pred_check_branch
          %288 = sbr.rel (%p286) target = $region56
        $region55: #{tpu_custom_call.1} parent=39 // pred_region
          %290 = dma.done [#allocation8], 256
        $region56: #{tpu_custom_call.1} parent=39 // pred_fallthru
          _
        %291 = sfence
        %p292 = pneg %p42
        %p293 = pneg %p39
        %s294 = sand.u32 %s55, 1
        %s295 = scalar_lea.sflag [#allocation3], %s294
        %s296 = sand.u32 %s55, 1
        %s297 = smul.addr %s296, 8
        %s298 = scalar_lea.vmem [#allocation6], %s297
        %p299 = pneg %p68
        %p300 = pneg %p65
        %s301 = sand.u32 %s26, 1
        %s302 = scalar_lea.sflag [#allocation8], %s301
        %s303 = sand.u32 %s81, 1
        %s304 = smul.addr %s303, 8
        %s305 = scalar_lea.vmem [#allocation7], %s304
        %p306 = pneg %p94
        %p307 = pneg %p91
        %p308 = scmp.lt.s32.totalorder %s26, 1
        %s309 = scalar_select %p308, %s26, 1
        %s310 = scalar_lea.vmem %s3, %s309
        %p311 = pneg %p120
        %p312 = pneg %p117
        %p313 = pneg %p141
        %p314 = pneg %p138
        %p315 = pneg %p167
        %p316 = pneg %p164
        %s317 = sand.u32 %s154, 1
        %s318 = scalar_lea.sflag [#allocation4], %s317
        %s319 = sand.u32 %s154, 1
        %s320 = scalar_lea.vmem [#allocation10], %s319
        %p321 = scmp.lt.s32.totalorder %s26, 1
        %s322 = scalar_select %p321, %s26, 1
        %s323 = scalar_lea.vmem %s3, %s322
        %s325 = smul.u32 %s26, 128
        %s326 = sld [smem:[#allocation2 + %s325]]
        %s327 = sadd.s32 %s325, 1
        %s328 = sld [smem:[#allocation2 + %s327]]
        %s329 = sadd.s32 %s325, 2
        %s330 = sld [smem:[#allocation2 + %s329]]
        %s331 = sadd.s32 %s325, 3
        %s332 = sld [smem:[#allocation2 + %s331]]
        %v333 = vld [vmem:[%s270] sm:$0xff]
        %v334 = vld [vmem:[%s280] sm:$0xff]
        %v335 = vstv %s326
        %v336 = vmul.f32 %v335, %v333
        %v337 = vstv %s328
        %v338 = vmul.f32 %v337, %v334
        %v339 = vadd.f32 %v336, %v338
        %v340 = vpack.c.bf16 %v339, %v339
        %v341 = vld [vmem:[#allocation9] sm:$0xf]
        %v342 = vld [vmem:[#allocation9 + $0x4] sm:$0xf]
        %v343 = vld [vmem:[#allocation9 + $0x8] sm:$0xf]
        %v344 = vld [vmem:[#allocation9 + $0xc] sm:$0xf]
        %v345 = vld [vmem:[%s323] sm:$0x1]
        %v347 = vperm.slane %v345, 0
        %v353 = vunpack.c.l.b16 %v341
        %v354 = vunpack.c.l.b16 %v342
        %v355 = vunpack.c.l.b16 %v343
        %v356 = vunpack.c.l.b16 %v344
        %v357 = vpack.c.b16 %v354, %v353
        %v358 = vpack.c.b16 %v356, %v355
        %vm361 = vcmask 261120
        %v363 = vsel %vm361, %v340, 0
        %365 = vmatpush.bf16.msra.mxu0 0
        %366 = vmatpush.bf16.msra.mxu0 0
        %367 = vmatpush.bf16.msra.mxu0 0
        %368 = vmatpush.bf16.msra.mxu0 0
        %369 = vmatpush.bf16.msra.mxu0 0
        %370 = vmatpush.bf16.msra.mxu0 0
        %371 = vmatpush.bf16.msra.mxu0 %v358
        %372 = vmatpush.bf16.msra.mxu0 %v357
        %373 = vmatmul.bf16.gmra.mxu0 %v363
        %v374 = vpop.f32.mrf.mxu0
        %v375 = vadd.f32 %v347, %v374
        %v376 = vpop.f32.mrf.mxu0
        %377 = vdwg.mxu0
        %v378 = vsub.f32 %v375, %v334
        %v379 = vand.u32 2147483647, %v378
        %v380 = vsel %vm361, %v379, 0.0
        %381 = vadd.xlane.f32.xlu0 %v380
        %v382 = vpop.xlane.xlu0 %381
        %v383 = vrot.slane %v382, 4
        %v384 = vadd.f32 %v382, %v383
        %v385 = vrot.slane %v384, 2
        %v386 = vadd.f32 %v384, %v385
        %v387 = vrot.slane %v386, 1
        %v388 = vadd.f32 %v386, %v387
        %v390 = vrot.slane %v378, 7
        %v392 = vsub.f32 %v378, %v390
        %v393 = vand.u32 2147483647, %v392
        %vm394 = vcmask 261121
        %v395 = vsel %vm394, %v393, 0.0
        %396 = vadd.xlane.f32.xlu0 %v395
        %v397 = vpop.xlane.xlu0 %396
        %v399 = vrot.slane %v397, 1
        %vm401 = vcmask 1046528
        %v402 = vsel %vm401, %v399, 0.0
        %v403 = vrot.slane %v402, 4
        %v404 = vadd.f32 %v402, %v403
        %v405 = vrot.slane %v404, 2
        %v406 = vadd.f32 %v404, %v405
        %v407 = vrot.slane %v406, 1
        %v408 = vadd.f32 %v406, %v407
        %v409 = vlaneseq
        %v410 = vand.u32 %v409, 127
        %vm411 = vcmp.eq.s32.totalorder %v410, 0
        %v412 = vstv %s330
        %v413 = vmul.f32 %v412, %v388
        %vm414 = vcmp.eq.s32.totalorder %v410, 1
        %v415 = vstv %s332
        %v416 = vmul.f32 %v415, %v408
        %v417 = vsel %vm414, %v416, 0.0
        %v418 = vsel %vm411, %v413, %v417
        %419 = vst [vmem:[%s320] sm:$0x1] %v418
        %s420 = sand.u32 %s154, 1
        %s421 = scalar_lea.sflag [#allocation4], %s420
        %s422 = sand.u32 %s154, 1
        %s423 = scalar_lea.vmem [#allocation10], %s422
        // Predicated region
        $region57: #{tpu_custom_call.1} parent=39 // pred_check
          %p424 = pneg %p164
        $region58: #{tpu_custom_call.1} parent=39 // pred_check_branch
          %426 = sbr.rel (%p424) target = $region60
        $region59: #{tpu_custom_call.1} parent=39 // pred_region
          %428 = vsyncadd %s421, 0
          %s429 = scalar_lea.hbm %s5, %s26
          %s431 = sshll.u32 %s423, 4
          %s432 = int_to_ptr.vmem [resolvable:$true] %s431
          %s433 = sshll.u32 %s429, 4
          %s434 = int_to_ptr.hbm [resolvable:$true] %s433
          %436 = dma.vmem_to_hbm [thread:$0]  %s432, 16, %s434, %s421
        $region60: #{tpu_custom_call.1} parent=39 // pred_fallthru
          _
      $region40: #{tpu_custom_call.1} parent=5 // pred_fallthru
        _
      %p437 = scmp.le.s32.totalorder 2, %s21
      // Predicated region
      $region61: #{tpu_custom_call.1} parent=5 // pred_check
        %p438 = pneg %p437
      $region62: #{tpu_custom_call.1} parent=5 // pred_check_branch
        %440 = sbr.rel (%p438) target = $region64
      $region63: #{tpu_custom_call.1} parent=5 // pred_region
        %s441 = ssub.s32 %s21, 2
        // Predicated region
        $region65: #{tpu_custom_call.1} parent=63 // pred_check
          %p442 = pneg %p170
        $region66: #{tpu_custom_call.1} parent=63 // pred_check_branch
          %444 = sbr.rel (%p442) target = $region68
        $region67: #{tpu_custom_call.1} parent=63 // pred_region
          %s445 = sand.u32 %s155, 1
          %s446 = scalar_lea.sflag [#allocation4], %s445
          %s447 = sand.u32 %s155, 1
          %s448 = scalar_lea.vmem [#allocation10], %s447
          %450 = dma.done %s446, 16
        $region68: #{tpu_custom_call.1} parent=63 // pred_fallthru
          _
      $region64: #{tpu_custom_call.1} parent=5 // pred_fallthru
        _
    $region6: #{tpu_custom_call.1} parent=1 // loop_footer
      %s25 = sadd.s32 1, %s21
    $region7: #{tpu_custom_call.1} parent=1 // loop_footer_branch
      %20 = sbr.rel target = $region3
    $region8: #{tpu_custom_call.1} parent=1 // loop_exit
      _
    %451 = vsyncpa [#allocation3], 1
    %s452 = scalar_lea.sflag [#allocation3], 1
    %453 = vsyncpa %s452, 1
    %454 = vsyncpa [#allocation8], 1
    %s455 = scalar_lea.sflag [#allocation8], 1
    %456 = vsyncpa %s455, 1
    %457 = vsyncpa [#allocation4], 1
    %s458 = scalar_lea.sflag [#allocation4], 1
    %459 = vsyncpa %s458, 1
    %460 = vsyncpa [#allocation5], 1
    %s461 = scalar_lea.sflag [#allocation5], 1
    %462 = vsyncpa %s461, 1

</llo_original>
